<compile_context>
chip_gen: v5e
topology: v5e:2x2
jax: 0.10.0
libtpu: 0.0.40
codegen_flags: <defaults>
</compile_context>

<pallas_src>
import functools

import jax
import jax.numpy as jnp
from jax import lax
from jax.experimental import pallas as pl
from jax.experimental.pallas import tpu as pltpu


# -----------------------------------------------------------------------------
# Kernel (single gridless invocation, whole problem resident in VMEM)
# -----------------------------------------------------------------------------
def _lstm_autoencoder_kernel(
    x_ref,      # (T*Bp, L)  time-major, batch- and lane-padded input
    w_ref,      # (3L, L)    [W_ih^T | W_hh^T | W_label^T], each padded (L,L)
    b_ref,      # (8, L)     row 0 = b_ih + b_hh, row 1 = b_label (padded)
    out_ref,    # (T*Bp, L)  lane-dense output slab (real cols [0,O))
    *,
    seq_len: int,
    batch_pad: int,
    hidden: int,
):
    T, Bp, H = seq_len, batch_pad, hidden
    L = 4 * H   # lane width of every block (== 128 for H=32)

    b_lstm = b_ref[0:1, :]   # (1, L)
    b_head = b_ref[1:2, :]   # (1, L)

    # (1) Input projection for ALL timesteps in one MXU matmul (M = T*Bp),
    #     with the combined bias folded in (hoisted out of the time loop).
    #     w_ref rows [0, L): W_ih^T zero-padded to (L, L).
    xg = jnp.dot(x_ref[...], w_ref[0:L, :],
                 preferred_element_type=jnp.float32) + b_lstm        # (T*Bp, L)

    # Lane mask: True on the cell-candidate ("g") gate block [2H, 3H).
    lane = lax.broadcasted_iota(jnp.int32, (Bp, L), 1)
    is_g = (lane >= 2 * H) & (lane < 3 * H)

    # (2) Serial recurrence, fully unrolled (T small & static).  h / c live as
    #     full (Bp, L) vregs whose *valid* values sit in the f-gate lane block
    #     [H, 2H); all other lanes carry bounded junk that is neutralised by
    #     the zero rows of the padded W_hh^T / W_out^T.
    h = jnp.zeros((Bp, L), jnp.float32)
    c = jnp.zeros((Bp, L), jnp.float32)
    hs = []
    for t in range(T):
        # w_ref rows [L, 2L): W_hh^T at rows [H, 2H) of a zero (L, L) block,
        # so only the valid h lanes contribute.  Re-sliced from the ref each
        # step so 16 weight vregs don't stay live across the whole unroll.
        gates = xg[t * Bp:(t + 1) * Bp, :] + jnp.dot(
            h, w_ref[L:2 * L, :], preferred_element_type=jnp.float32)  # (Bp, L)

        # Full-vreg nonlinearities + lane select (PyTorch gate order i,f,g,o):
        #   act  lane blocks: [i, f, g, o]
        #   act2 lane blocks: [g, o, i, f]   (roll by 2H; direction irrelevant)
        act = jnp.where(is_g, jnp.tanh(gates), jax.nn.sigmoid(gates))
        act2 = pltpu.roll(act, 2 * H, 1)
        # prod blocks: [i*g, f*o, g*i, o*f]; rolling by H lands i*g in the
        # f block no matter the roll direction (it sits in blocks 0 and 2).
        ig = pltpu.roll(act * act2, H, 1)

        c = act * c + ig            # f block: f * c_prev + i * g
        h = act2 * jnp.tanh(c)      # f block: o * tanh(c)
        hs.append(h)

    # (3) Output head applied once over all T*Bp rows; single unmasked store.
    #     w_ref rows [2L, 3L): W_label^T at rows [H, 2H), cols [0, O).
    hs_all = jnp.concatenate(hs, axis=0)                              # (T*Bp, L)
    y = jnp.dot(hs_all, w_ref[2 * L:3 * L, :],
                preferred_element_type=jnp.float32) + b_head
    out_ref[...] = y.astype(out_ref.dtype)


# -----------------------------------------------------------------------------
# Wrapper
# -----------------------------------------------------------------------------
def lstm_autoencoder_forward(x, w_ih, w_hh, b_ih, b_hh, w_out, b_out):
    """x: (B, T, D) float32.  Returns (B, T, O)."""
    B, T, D = x.shape
    H = w_hh.shape[1]
    O = w_out.shape[0]
    L = 4 * H
    assert L % 128 == 0 and D <= L and O <= L, "kernel assumes lane-aligned 4*hidden"
    Bp = ((B + 7) // 8) * 8          # pad batch to the sublane width

    f32 = jnp.float32
    # Time-major, batch-padded, lane-padded input: row t*Bp + b.
    x_tm = jnp.transpose(x, (1, 0, 2)).astype(f32)                       # (T, B, D)
    x_pad = jnp.zeros((T, Bp, L), f32).at[:, :B, :D].set(x_tm).reshape(T * Bp, L)

    # Packed, 128-lane-aligned weight slab.  W_hh^T / W_label^T go at rows
    # [H, 2H) because the kernel carries h in the f-gate lane block.
    wih_pad = jnp.zeros((L, L), f32).at[:D, :].set(w_ih.T)
    whh_pad = jnp.zeros((L, L), f32).at[H:2 * H, :].set(w_hh.T)
    wout_pad = jnp.zeros((L, L), f32).at[H:2 * H, :O].set(w_out.T)
    w_packed = jnp.concatenate([wih_pad, whh_pad, wout_pad], axis=0)     # (3L, L)

    # Packed bias slab: row 0 = b_ih + b_hh, row 1 = b_label (lane-padded).
    b_packed = (jnp.zeros((8, L), f32)
                .at[0, :].set(b_ih + b_hh)
                .at[1, :O].set(b_out))

    kernel = functools.partial(
        _lstm_autoencoder_kernel, seq_len=T, batch_pad=Bp, hidden=H)

    out_flat = pl.pallas_call(
        kernel,
        out_shape=jax.ShapeDtypeStruct((T * Bp, L), x.dtype),
    )(x_pad, w_packed, b_packed)

    # Drop batch / lane padding and restore batch-first layout.
    out = out_flat.reshape(T, Bp, L)[:, :B, :O]
    return jnp.transpose(out, (1, 0, 2))                                 # (B, T, O)


# -----------------------------------------------------------------------------
# Pure-JAX reference (for correctness check)
# -----------------------------------------------------------------------------
def lstm_autoencoder_reference(x, w_ih, w_hh, b_ih, b_hh, w_out, b_out):
    B, T, D = x.shape
    H = w_hh.shape[1]

    def step(carry, x_t):
        h, c = carry
        gates = x_t @ w_ih.T + b_ih + h @ w_hh.T + b_hh
        i = jax.nn.sigmoid(gates[:, 0 * H:1 * H])
        f = jax.nn.sigmoid(gates[:, 1 * H:2 * H])
        g = jnp.tanh(gates[:, 2 * H:3 * H])
        o = jax.nn.sigmoid(gates[:, 3 * H:4 * H])
        c = f * c + i * g
        h = o * jnp.tanh(c)
        return (h, c), h

    h0 = jnp.zeros((B, H), jnp.float32)
    c0 = jnp.zeros((B, H), jnp.float32)
    _, hs = lax.scan(step, (h0, c0), jnp.transpose(x, (1, 0, 2)))  # (T, B, H)
    out = hs @ w_out.T + b_out                                     # (T, B, O)
    return jnp.transpose(out, (1, 0, 2))


# -----------------------------------------------------------------------------
# Main
# -----------------------------------------------------------------------------
if __name__ == "__main__":
    # Small shapes consistent with the module's forward:
    # x: (batch, seq, input_size), input_size == output_size == 4.
    B, T, D, H, O = 2, 8, 4, 32, 4

    key = jax.random.PRNGKey(0)
    kx, k1, k2, k3, k4, k5, k6 = jax.random.split(key, 7)

    x = jax.random.normal(kx, (B, T, D), dtype=jnp.float32)

    # Deterministic parameter init, PyTorch-style U(-1/sqrt(H), 1/sqrt(H)).
    bound = 1.0 / jnp.sqrt(jnp.float32(H))
    w_ih = jax.random.uniform(k1, (4 * H, D), jnp.float32, -bound, bound)
    w_hh = jax.random.uniform(k2, (4 * H, H), jnp.float32, -bound, bound)
    b_ih = jax.random.uniform(k3, (4 * H,), jnp.float32, -bound, bound)
    b_hh = jax.random.uniform(k4, (4 * H,), jnp.float32, -bound, bound)
    w_out = jax.random.uniform(k5, (O, H), jnp.float32, -bound, bound)
    b_out = jax.random.uniform(k6, (O,), jnp.float32, -bound, bound)

    out = jax.jit(lstm_autoencoder_forward)(x, w_ih, w_hh, b_ih, b_hh, w_out, b_out)
    out = jax.block_until_ready(out)

    ref = lstm_autoencoder_reference(x, w_ih, w_hh, b_ih, b_hh, w_out, b_out)
    assert out.shape == (B, T, O) == x.shape
    assert jnp.allclose(out, ref, atol=1e-5, rtol=1e-5), "mismatch vs reference"

    print("KERNEL_OK")
</pallas_src>

<mosaic_0001>
module attributes {stable_mosaic.version = 11 : i64} {
  func.func @_lstm_autoencoder_kernel(%arg0: memref<64x128xf32, #tpu.memory_space<vmem>>, %arg1: memref<384x128xf32, #tpu.memory_space<vmem>>, %arg2: memref<8x128xf32, #tpu.memory_space<vmem>>, %arg3: memref<64x128xf32, #tpu.memory_space<vmem>>) attributes {dimension_semantics = [], scalar_prefetch = 0 : i64, scratch_operands = 0 : i64, tpu.core_type = #tpu.core_type<tc>} {
    %c0 = arith.constant 0 : index
    %c0_0 = arith.constant 0 : index
    %0 = vector.load %arg2[%c0, %c0_0] : memref<8x128xf32, #tpu.memory_space<vmem>>, vector<1x128xf32>
    %c1 = arith.constant 1 : index
    %c0_1 = arith.constant 0 : index
    %1 = vector.load %arg2[%c1, %c0_1] : memref<8x128xf32, #tpu.memory_space<vmem>>, vector<1x128xf32>
    %c0_2 = arith.constant 0 : index
    %c0_3 = arith.constant 0 : index
    %2 = vector.load %arg0[%c0_2, %c0_3] : memref<64x128xf32, #tpu.memory_space<vmem>>, vector<64x128xf32>
    %c0_4 = arith.constant 0 : index
    %c0_5 = arith.constant 0 : index
    %3 = vector.load %arg1[%c0_4, %c0_5] : memref<384x128xf32, #tpu.memory_space<vmem>>, vector<128x128xf32>
    %cst = arith.constant dense<0.000000e+00> : vector<64x128xf32>
    %4 = tpu.matmul %2, %3, %cst {dimension_numbers = #tpu.dot_dimension_numbers<[1], [0], [0], [1], [0, 0, 1, 1], [], []>} : vector<64x128xf32>, vector<128x128xf32>, vector<64x128xf32> -> vector<64x128xf32>
    %5 = vector.broadcast %0 : vector<1x128xf32> to vector<64x128xf32>
    %6 = arith.addf %4, %5 : vector<64x128xf32>
    %7 = tpu.iota {dimensions = array<i32: 1>} : vector<8x128xi32>
    %c64_i32 = arith.constant 64 : i32
    %8 = vector.broadcast %c64_i32 : i32 to vector<8x128xi32>
    %9 = arith.cmpi sge, %7, %8 : vector<8x128xi32>
    %c96_i32 = arith.constant 96 : i32
    %10 = vector.broadcast %c96_i32 : i32 to vector<8x128xi32>
    %11 = arith.cmpi slt, %7, %10 : vector<8x128xi32>
    %12 = arith.andi %9, %11 : vector<8x128xi1>
    %cst_6 = arith.constant 0.000000e+00 : f32
    %13 = vector.broadcast %cst_6 : f32 to vector<8x128xf32>
    %cst_7 = arith.constant 0.000000e+00 : f32
    %14 = vector.broadcast %cst_7 : f32 to vector<8x128xf32>
    %15 = vector.extract_strided_slice %6 {offsets = [0, 0], sizes = [8, 128], strides = [1, 1]} : vector<64x128xf32> to vector<8x128xf32>
    %c128 = arith.constant 128 : index
    %c0_8 = arith.constant 0 : index
    %16 = vector.load %arg1[%c128, %c0_8] : memref<384x128xf32, #tpu.memory_space<vmem>>, vector<128x128xf32>
    %cst_9 = arith.constant dense<0.000000e+00> : vector<8x128xf32>
    %17 = tpu.matmul %13, %16, %cst_9 {dimension_numbers = #tpu.dot_dimension_numbers<[1], [0], [0], [1], [0, 0, 1, 1], [], []>} : vector<8x128xf32>, vector<128x128xf32>, vector<8x128xf32> -> vector<8x128xf32>
    %18 = arith.addf %15, %17 : vector<8x128xf32>
    %19 = math.tanh %18 : vector<8x128xf32>
    %20 = arith.negf %18 : vector<8x128xf32>
    %21 = math.exp %20 : vector<8x128xf32>
    %cst_10 = arith.constant 1.000000e+00 : f32
    %22 = vector.broadcast %cst_10 : f32 to vector<8x128xf32>
    %23 = arith.addf %22, %21 : vector<8x128xf32>
    %24 = arith.divf %22, %23 : vector<8x128xf32>
    %25 = arith.select %12, %19, %24 : vector<8x128xi1>, vector<8x128xf32>
    %c64_i32_11 = arith.constant 64 : i32
    %26 = tpu.dynamic_rotate %25 by %c64_i32_11 dim 1 : vector<8x128xf32>, i32 -> vector<8x128xf32>
    %27 = arith.mulf %25, %26 : vector<8x128xf32>
    %c32_i32 = arith.constant 32 : i32
    %28 = tpu.dynamic_rotate %27 by %c32_i32 dim 1 : vector<8x128xf32>, i32 -> vector<8x128xf32>
    %29 = arith.mulf %25, %14 : vector<8x128xf32>
    %30 = arith.addf %29, %28 : vector<8x128xf32>
    %31 = math.tanh %30 : vector<8x128xf32>
    %32 = arith.mulf %26, %31 : vector<8x128xf32>
    %33 = vector.extract_strided_slice %6 {offsets = [8, 0], sizes = [8, 128], strides = [1, 1]} : vector<64x128xf32> to vector<8x128xf32>
    %c128_12 = arith.constant 128 : index
    %c0_13 = arith.constant 0 : index
    %34 = vector.load %arg1[%c128_12, %c0_13] : memref<384x128xf32, #tpu.memory_space<vmem>>, vector<128x128xf32>
    %cst_14 = arith.constant dense<0.000000e+00> : vector<8x128xf32>
    %35 = tpu.matmul %32, %34, %cst_14 {dimension_numbers = #tpu.dot_dimension_numbers<[1], [0], [0], [1], [0, 0, 1, 1], [], []>} : vector<8x128xf32>, vector<128x128xf32>, vector<8x128xf32> -> vector<8x128xf32>
    %36 = arith.addf %33, %35 : vector<8x128xf32>
    %37 = math.tanh %36 : vector<8x128xf32>
    %38 = arith.negf %36 : vector<8x128xf32>
    %39 = math.exp %38 : vector<8x128xf32>
    %cst_15 = arith.constant 1.000000e+00 : f32
    %40 = vector.broadcast %cst_15 : f32 to vector<8x128xf32>
    %41 = arith.addf %40, %39 : vector<8x128xf32>
    %42 = arith.divf %40, %41 : vector<8x128xf32>
    %43 = arith.select %12, %37, %42 : vector<8x128xi1>, vector<8x128xf32>
    %c64_i32_16 = arith.constant 64 : i32
    %44 = tpu.dynamic_rotate %43 by %c64_i32_16 dim 1 : vector<8x128xf32>, i32 -> vector<8x128xf32>
    %45 = arith.mulf %43, %44 : vector<8x128xf32>
    %c32_i32_17 = arith.constant 32 : i32
    %46 = tpu.dynamic_rotate %45 by %c32_i32_17 dim 1 : vector<8x128xf32>, i32 -> vector<8x128xf32>
    %47 = arith.mulf %43, %30 : vector<8x128xf32>
    %48 = arith.addf %47, %46 : vector<8x128xf32>
    %49 = math.tanh %48 : vector<8x128xf32>
    %50 = arith.mulf %44, %49 : vector<8x128xf32>
    %51 = vector.extract_strided_slice %6 {offsets = [16, 0], sizes = [8, 128], strides = [1, 1]} : vector<64x128xf32> to vector<8x128xf32>
    %c128_18 = arith.constant 128 : index
    %c0_19 = arith.constant 0 : index
    %52 = vector.load %arg1[%c128_18, %c0_19] : memref<384x128xf32, #tpu.memory_space<vmem>>, vector<128x128xf32>
    %cst_20 = arith.constant dense<0.000000e+00> : vector<8x128xf32>
    %53 = tpu.matmul %50, %52, %cst_20 {dimension_numbers = #tpu.dot_dimension_numbers<[1], [0], [0], [1], [0, 0, 1, 1], [], []>} : vector<8x128xf32>, vector<128x128xf32>, vector<8x128xf32> -> vector<8x128xf32>
    %54 = arith.addf %51, %53 : vector<8x128xf32>
    %55 = math.tanh %54 : vector<8x128xf32>
    %56 = arith.negf %54 : vector<8x128xf32>
    %57 = math.exp %56 : vector<8x128xf32>
    %cst_21 = arith.constant 1.000000e+00 : f32
    %58 = vector.broadcast %cst_21 : f32 to vector<8x128xf32>
    %59 = arith.addf %58, %57 : vector<8x128xf32>
    %60 = arith.divf %58, %59 : vector<8x128xf32>
    %61 = arith.select %12, %55, %60 : vector<8x128xi1>, vector<8x128xf32>
    %c64_i32_22 = arith.constant 64 : i32
    %62 = tpu.dynamic_rotate %61 by %c64_i32_22 dim 1 : vector<8x128xf32>, i32 -> vector<8x128xf32>
    %63 = arith.mulf %61, %62 : vector<8x128xf32>
    %c32_i32_23 = arith.constant 32 : i32
    %64 = tpu.dynamic_rotate %63 by %c32_i32_23 dim 1 : vector<8x128xf32>, i32 -> vector<8x128xf32>
    %65 = arith.mulf %61, %48 : vector<8x128xf32>
    %66 = arith.addf %65, %64 : vector<8x128xf32>
    %67 = math.tanh %66 : vector<8x128xf32>
    %68 = arith.mulf %62, %67 : vector<8x128xf32>
    %69 = vector.extract_strided_slice %6 {offsets = [24, 0], sizes = [8, 128], strides = [1, 1]} : vector<64x128xf32> to vector<8x128xf32>
    %c128_24 = arith.constant 128 : index
    %c0_25 = arith.constant 0 : index
    %70 = vector.load %arg1[%c128_24, %c0_25] : memref<384x128xf32, #tpu.memory_space<vmem>>, vector<128x128xf32>
    %cst_26 = arith.constant dense<0.000000e+00> : vector<8x128xf32>
    %71 = tpu.matmul %68, %70, %cst_26 {dimension_numbers = #tpu.dot_dimension_numbers<[1], [0], [0], [1], [0, 0, 1, 1], [], []>} : vector<8x128xf32>, vector<128x128xf32>, vector<8x128xf32> -> vector<8x128xf32>
    %72 = arith.addf %69, %71 : vector<8x128xf32>
    %73 = math.tanh %72 : vector<8x128xf32>
    %74 = arith.negf %72 : vector<8x128xf32>
    %75 = math.exp %74 : vector<8x128xf32>
    %cst_27 = arith.constant 1.000000e+00 : f32
    %76 = vector.broadcast %cst_27 : f32 to vector<8x128xf32>
    %77 = arith.addf %76, %75 : vector<8x128xf32>
    %78 = arith.divf %76, %77 : vector<8x128xf32>
    %79 = arith.select %12, %73, %78 : vector<8x128xi1>, vector<8x128xf32>
    %c64_i32_28 = arith.constant 64 : i32
    %80 = tpu.dynamic_rotate %79 by %c64_i32_28 dim 1 : vector<8x128xf32>, i32 -> vector<8x128xf32>
    %81 = arith.mulf %79, %80 : vector<8x128xf32>
    %c32_i32_29 = arith.constant 32 : i32
    %82 = tpu.dynamic_rotate %81 by %c32_i32_29 dim 1 : vector<8x128xf32>, i32 -> vector<8x128xf32>
    %83 = arith.mulf %79, %66 : vector<8x128xf32>
    %84 = arith.addf %83, %82 : vector<8x128xf32>
    %85 = math.tanh %84 : vector<8x128xf32>
    %86 = arith.mulf %80, %85 : vector<8x128xf32>
    %87 = vector.extract_strided_slice %6 {offsets = [32, 0], sizes = [8, 128], strides = [1, 1]} : vector<64x128xf32> to vector<8x128xf32>
    %c128_30 = arith.constant 128 : index
    %c0_31 = arith.constant 0 : index
    %88 = vector.load %arg1[%c128_30, %c0_31] : memref<384x128xf32, #tpu.memory_space<vmem>>, vector<128x128xf32>
    %cst_32 = arith.constant dense<0.000000e+00> : vector<8x128xf32>
    %89 = tpu.matmul %86, %88, %cst_32 {dimension_numbers = #tpu.dot_dimension_numbers<[1], [0], [0], [1], [0, 0, 1, 1], [], []>} : vector<8x128xf32>, vector<128x128xf32>, vector<8x128xf32> -> vector<8x128xf32>
    %90 = arith.addf %87, %89 : vector<8x128xf32>
    %91 = math.tanh %90 : vector<8x128xf32>
    %92 = arith.negf %90 : vector<8x128xf32>
    %93 = math.exp %92 : vector<8x128xf32>
    %cst_33 = arith.constant 1.000000e+00 : f32
    %94 = vector.broadcast %cst_33 : f32 to vector<8x128xf32>
    %95 = arith.addf %94, %93 : vector<8x128xf32>
    %96 = arith.divf %94, %95 : vector<8x128xf32>
    %97 = arith.select %12, %91, %96 : vector<8x128xi1>, vector<8x128xf32>
    %c64_i32_34 = arith.constant 64 : i32
    %98 = tpu.dynamic_rotate %97 by %c64_i32_34 dim 1 : vector<8x128xf32>, i32 -> vector<8x128xf32>
    %99 = arith.mulf %97, %98 : vector<8x128xf32>
    %c32_i32_35 = arith.constant 32 : i32
    %100 = tpu.dynamic_rotate %99 by %c32_i32_35 dim 1 : vector<8x128xf32>, i32 -> vector<8x128xf32>
    %101 = arith.mulf %97, %84 : vector<8x128xf32>
    %102 = arith.addf %101, %100 : vector<8x128xf32>
    %103 = math.tanh %102 : vector<8x128xf32>
    %104 = arith.mulf %98, %103 : vector<8x128xf32>
    %105 = vector.extract_strided_slice %6 {offsets = [40, 0], sizes = [8, 128], strides = [1, 1]} : vector<64x128xf32> to vector<8x128xf32>
    %c128_36 = arith.constant 128 : index
    %c0_37 = arith.constant 0 : index
    %106 = vector.load %arg1[%c128_36, %c0_37] : memref<384x128xf32, #tpu.memory_space<vmem>>, vector<128x128xf32>
    %cst_38 = arith.constant dense<0.000000e+00> : vector<8x128xf32>
    %107 = tpu.matmul %104, %106, %cst_38 {dimension_numbers = #tpu.dot_dimension_numbers<[1], [0], [0], [1], [0, 0, 1, 1], [], []>} : vector<8x128xf32>, vector<128x128xf32>, vector<8x128xf32> -> vector<8x128xf32>
    %108 = arith.addf %105, %107 : vector<8x128xf32>
    %109 = math.tanh %108 : vector<8x128xf32>
    %110 = arith.negf %108 : vector<8x128xf32>
    %111 = math.exp %110 : vector<8x128xf32>
    %cst_39 = arith.constant 1.000000e+00 : f32
    %112 = vector.broadcast %cst_39 : f32 to vector<8x128xf32>
    %113 = arith.addf %112, %111 : vector<8x128xf32>
    %114 = arith.divf %112, %113 : vector<8x128xf32>
    %115 = arith.select %12, %109, %114 : vector<8x128xi1>, vector<8x128xf32>
    %c64_i32_40 = arith.constant 64 : i32
    %116 = tpu.dynamic_rotate %115 by %c64_i32_40 dim 1 : vector<8x128xf32>, i32 -> vector<8x128xf32>
    %117 = arith.mulf %115, %116 : vector<8x128xf32>
    %c32_i32_41 = arith.constant 32 : i32
    %118 = tpu.dynamic_rotate %117 by %c32_i32_41 dim 1 : vector<8x128xf32>, i32 -> vector<8x128xf32>
    %119 = arith.mulf %115, %102 : vector<8x128xf32>
    %120 = arith.addf %119, %118 : vector<8x128xf32>
    %121 = math.tanh %120 : vector<8x128xf32>
    %122 = arith.mulf %116, %121 : vector<8x128xf32>
    %123 = vector.extract_strided_slice %6 {offsets = [48, 0], sizes = [8, 128], strides = [1, 1]} : vector<64x128xf32> to vector<8x128xf32>
    %c128_42 = arith.constant 128 : index
    %c0_43 = arith.constant 0 : index
    %124 = vector.load %arg1[%c128_42, %c0_43] : memref<384x128xf32, #tpu.memory_space<vmem>>, vector<128x128xf32>
    %cst_44 = arith.constant dense<0.000000e+00> : vector<8x128xf32>
    %125 = tpu.matmul %122, %124, %cst_44 {dimension_numbers = #tpu.dot_dimension_numbers<[1], [0], [0], [1], [0, 0, 1, 1], [], []>} : vector<8x128xf32>, vector<128x128xf32>, vector<8x128xf32> -> vector<8x128xf32>
    %126 = arith.addf %123, %125 : vector<8x128xf32>
    %127 = math.tanh %126 : vector<8x128xf32>
    %128 = arith.negf %126 : vector<8x128xf32>
    %129 = math.exp %128 : vector<8x128xf32>
    %cst_45 = arith.constant 1.000000e+00 : f32
    %130 = vector.broadcast %cst_45 : f32 to vector<8x128xf32>
    %131 = arith.addf %130, %129 : vector<8x128xf32>
    %132 = arith.divf %130, %131 : vector<8x128xf32>
    %133 = arith.select %12, %127, %132 : vector<8x128xi1>, vector<8x128xf32>
    %c64_i32_46 = arith.constant 64 : i32
    %134 = tpu.dynamic_rotate %133 by %c64_i32_46 dim 1 : vector<8x128xf32>, i32 -> vector<8x128xf32>
    %135 = arith.mulf %133, %134 : vector<8x128xf32>
    %c32_i32_47 = arith.constant 32 : i32
    %136 = tpu.dynamic_rotate %135 by %c32_i32_47 dim 1 : vector<8x128xf32>, i32 -> vector<8x128xf32>
    %137 = arith.mulf %133, %120 : vector<8x128xf32>
    %138 = arith.addf %137, %136 : vector<8x128xf32>
    %139 = math.tanh %138 : vector<8x128xf32>
    %140 = arith.mulf %134, %139 : vector<8x128xf32>
    %141 = vector.extract_strided_slice %6 {offsets = [56, 0], sizes = [8, 128], strides = [1, 1]} : vector<64x128xf32> to vector<8x128xf32>
    %c128_48 = arith.constant 128 : index
    %c0_49 = arith.constant 0 : index
    %142 = vector.load %arg1[%c128_48, %c0_49] : memref<384x128xf32, #tpu.memory_space<vmem>>, vector<128x128xf32>
    %cst_50 = arith.constant dense<0.000000e+00> : vector<8x128xf32>
    %143 = tpu.matmul %140, %142, %cst_50 {dimension_numbers = #tpu.dot_dimension_numbers<[1], [0], [0], [1], [0, 0, 1, 1], [], []>} : vector<8x128xf32>, vector<128x128xf32>, vector<8x128xf32> -> vector<8x128xf32>
    %144 = arith.addf %141, %143 : vector<8x128xf32>
    %145 = math.tanh %144 : vector<8x128xf32>
    %146 = arith.negf %144 : vector<8x128xf32>
    %147 = math.exp %146 : vector<8x128xf32>
    %cst_51 = arith.constant 1.000000e+00 : f32
    %148 = vector.broadcast %cst_51 : f32 to vector<8x128xf32>
    %149 = arith.addf %148, %147 : vector<8x128xf32>
    %150 = arith.divf %148, %149 : vector<8x128xf32>
    %151 = arith.select %12, %145, %150 : vector<8x128xi1>, vector<8x128xf32>
    %c64_i32_52 = arith.constant 64 : i32
    %152 = tpu.dynamic_rotate %151 by %c64_i32_52 dim 1 : vector<8x128xf32>, i32 -> vector<8x128xf32>
    %153 = arith.mulf %151, %152 : vector<8x128xf32>
    %c32_i32_53 = arith.constant 32 : i32
    %154 = tpu.dynamic_rotate %153 by %c32_i32_53 dim 1 : vector<8x128xf32>, i32 -> vector<8x128xf32>
    %155 = arith.mulf %151, %138 : vector<8x128xf32>
    %156 = arith.addf %155, %154 : vector<8x128xf32>
    %157 = math.tanh %156 : vector<8x128xf32>
    %158 = arith.mulf %152, %157 : vector<8x128xf32>
    %159 = tpu.concatenate %32, %50, %68, %86, %104, %122, %140, %158 in 0 : vector<8x128xf32>, vector<8x128xf32>, vector<8x128xf32>, vector<8x128xf32>, vector<8x128xf32>, vector<8x128xf32>, vector<8x128xf32>, vector<8x128xf32> -> vector<64x128xf32>
    %c256 = arith.constant 256 : index
    %c0_54 = arith.constant 0 : index
    %160 = vector.load %arg1[%c256, %c0_54] : memref<384x128xf32, #tpu.memory_space<vmem>>, vector<128x128xf32>
    %cst_55 = arith.constant dense<0.000000e+00> : vector<64x128xf32>
    %161 = tpu.matmul %159, %160, %cst_55 {dimension_numbers = #tpu.dot_dimension_numbers<[1], [0], [0], [1], [0, 0, 1, 1], [], []>} : vector<64x128xf32>, vector<128x128xf32>, vector<64x128xf32> -> vector<64x128xf32>
    %162 = vector.broadcast %1 : vector<1x128xf32> to vector<64x128xf32>
    %163 = arith.addf %161, %162 : vector<64x128xf32>
    %c0_56 = arith.constant 0 : index
    %c0_57 = arith.constant 0 : index
    %164 = vector.load %arg3[%c0_56, %c0_57] : memref<64x128xf32, #tpu.memory_space<vmem>>, vector<64x128xf32>
    tpu.vector_store %arg3[%c0_56, %c0_57], %163 {strides = array<i32>} : memref<64x128xf32, #tpu.memory_space<vmem>>, vector<64x128xf32>,
    return
  }
}

</mosaic_0001>

<llo_original>
// kernel: lstm_autoencoder_forward.1
$region0: #{lstm_autoencoder_forward.1}
  #allocation0 [shape = 'u32[]', space=smem, size = 0x4, offset = 0x4, fixed_abs, tag = 'smem constant byte address 0x4 - core index']
  #allocation1 [shape = 'u32[72,128]{1,0:T(1,128)}', space=vmem, size = 0x9000, scoped, tag = 'internal scratch']
  %s0 = inlined_call_operand.vmem [shape: f32[64,128], index: 0, kind: input, shape index: {}]
  %s1 = inlined_call_operand.vmem [shape: f32[384,128], index: 1, kind: input, shape index: {}]
  %s2 = inlined_call_operand.vmem [shape: f32[8,128], index: 2, kind: input, shape index: {}]
  %s3 = inlined_call_operand.vmem [shape: f32[64,128], index: 3, kind: output, shape index: {}]
  %s4 = sld [smem:[#allocation0]]
  $region22: #{lstm_autoencoder_forward.1} parent=0
    _
  %s6 = ssub.s32 1, %s4
  %s7 = scalar_select 0, %s6, %s4
  // Predicated region
  $region2: #{lstm_autoencoder_forward.1} parent=0 // pred_check
    _
  $region3: #{lstm_autoencoder_forward.1} parent=0 // pred_check_branch
    %9 = sbr.rel (0) target = $region5
  $region4: #{lstm_autoencoder_forward.1} parent=0 // pred_region
    _
  $region5: #{lstm_autoencoder_forward.1} parent=0 // pred_fallthru
    _
  // Predicated region
  $region6: #{lstm_autoencoder_forward.1} parent=0 // pred_check
    _
  $region7: #{lstm_autoencoder_forward.1} parent=0 // pred_check_branch
    %11 = sbr.rel (0) target = $region9
  $region8: #{lstm_autoencoder_forward.1} parent=0 // pred_region
    _
  $region9: #{lstm_autoencoder_forward.1} parent=0 // pred_fallthru
    _
  // Predicated region
  $region10: #{lstm_autoencoder_forward.1} parent=0 // pred_check
    _
  $region11: #{lstm_autoencoder_forward.1} parent=0 // pred_check_branch
    %13 = sbr.rel (0) target = $region13
  $region12: #{lstm_autoencoder_forward.1} parent=0 // pred_region
    _
  $region13: #{lstm_autoencoder_forward.1} parent=0 // pred_fallthru
    _
  %v14 = vld [vmem:[%s2] sm:$0x1]
  %v15 = vld [vmem:[%s2 + $0x1] sm:$0x1]
  %v16 = vld [vmem:[%s0] sm:$0xff]
  %v17 = vld [vmem:[%s0 + $0x8] sm:$0xff]
  %v18 = vld [vmem:[%s0 + $0x10] sm:$0xff]
  %v19 = vld [vmem:[%s0 + $0x18] sm:$0xff]
  %v20 = vld [vmem:[%s0 + $0x20] sm:$0xff]
  %v21 = vld [vmem:[%s0 + $0x28] sm:$0xff]
  %v22 = vld [vmem:[%s0 + $0x30] sm:$0xff]
  %v23 = vld [vmem:[%s0 + $0x38] sm:$0xff]
  %v24 = vld [vmem:[%s1] sm:$0xff]
  %v25 = vld [vmem:[%s1 + $0x8] sm:$0xff]
  %v26 = vld [vmem:[%s1 + $0x10] sm:$0xff]
  %v27 = vld [vmem:[%s1 + $0x18] sm:$0xff]
  %v28 = vld [vmem:[%s1 + $0x20] sm:$0xff]
  %v29 = vld [vmem:[%s1 + $0x28] sm:$0xff]
  %v30 = vld [vmem:[%s1 + $0x30] sm:$0xff]
  %v31 = vld [vmem:[%s1 + $0x38] sm:$0xff]
  %v32 = vld [vmem:[%s1 + $0x40] sm:$0xff]
  %v33 = vld [vmem:[%s1 + $0x48] sm:$0xff]
  %v34 = vld [vmem:[%s1 + $0x50] sm:$0xff]
  %v35 = vld [vmem:[%s1 + $0x58] sm:$0xff]
  %v36 = vld [vmem:[%s1 + $0x60] sm:$0xff]
  %v37 = vld [vmem:[%s1 + $0x68] sm:$0xff]
  %v38 = vld [vmem:[%s1 + $0x70] sm:$0xff]
  %v39 = vld [vmem:[%s1 + $0x78] sm:$0xff]
  %v40 = vperm.slane %v14, 0
  %41 = vmatpush.msra.mxu0 %v39
  %42 = vmatpush.msra.mxu0 %v38
  %43 = vmatpush.msra.mxu0 %v37
  %44 = vmatpush.msra.mxu0 %v36
  %45 = vmatpush.msra.mxu0 %v35
  %46 = vmatpush.msra.mxu0 %v34
  %47 = vmatpush.msra.mxu0 %v33
  %48 = vmatpush.msra.mxu0 %v32
  %49 = vmatpush.msra.mxu0 %v31
  %50 = vmatpush.msra.mxu0 %v30
  %51 = vmatpush.msra.mxu0 %v29
  %52 = vmatpush.msra.mxu0 %v28
  %53 = vmatpush.msra.mxu0 %v27
  %54 = vmatpush.msra.mxu0 %v26
  %55 = vmatpush.msra.mxu0 %v25
  %56 = vmatpush.msra.mxu0 %v24
  %57 = vmatmul.f32.gmra.mxu0 %v16
  %v58 = vpop.f32.mrf.mxu0
  %v59 = vadd.f32 %v40, %v58
  %60 = vmatmul.f32.gmra.mxu0 %v17
  %v61 = vpop.f32.mrf.mxu0
  %v62 = vadd.f32 %v40, %v61
  %63 = vmatmul.f32.gmra.mxu0 %v18
  %v64 = vpop.f32.mrf.mxu0
  %v65 = vadd.f32 %v40, %v64
  %66 = vmatmul.f32.gmra.mxu0 %v19
  %v67 = vpop.f32.mrf.mxu0
  %v68 = vadd.f32 %v40, %v67
  %69 = vmatmul.f32.gmra.mxu0 %v20
  %v70 = vpop.f32.mrf.mxu0
  %v71 = vadd.f32 %v40, %v70
  %72 = vmatmul.f32.gmra.mxu0 %v21
  %v73 = vpop.f32.mrf.mxu0
  %v74 = vadd.f32 %v40, %v73
  %75 = vmatmul.f32.gmra.mxu0 %v22
  %v76 = vpop.f32.mrf.mxu0
  %v77 = vadd.f32 %v40, %v76
  %78 = vmatmul.f32.gmra.mxu0 %v23
  %v79 = vpop.f32.mrf.mxu0
  %v80 = vadd.f32 %v40, %v79
  %81 = vdwg.mxu0
  %v82 = vlaneseq
  %v83 = vand.u32 %v82, 127
  %vm84 = vcmp.ge.s32.totalorder %v83, 64
  %vm85 = vcmp.lt.s32.totalorder %v83, 96
  %vm86 = vmand %vm84, %vm85
  %v87 = vld [vmem:[%s1 + $0x80] sm:$0xff]
  %v88 = vld [vmem:[%s1 + $0x88] sm:$0xff]
  %v89 = vld [vmem:[%s1 + $0x90] sm:$0xff]
  %v90 = vld [vmem:[%s1 + $0x98] sm:$0xff]
  %v91 = vld [vmem:[%s1 + $0xa0] sm:$0xff]
  %v92 = vld [vmem:[%s1 + $0xa8] sm:$0xff]
  %v93 = vld [vmem:[%s1 + $0xb0] sm:$0xff]
  %v94 = vld [vmem:[%s1 + $0xb8] sm:$0xff]
  %v95 = vld [vmem:[%s1 + $0xc0] sm:$0xff]
  %v96 = vld [vmem:[%s1 + $0xc8] sm:$0xff]
  %v97 = vld [vmem:[%s1 + $0xd0] sm:$0xff]
  %v98 = vld [vmem:[%s1 + $0xd8] sm:$0xff]
  %v99 = vld [vmem:[%s1 + $0xe0] sm:$0xff]
  %v100 = vld [vmem:[%s1 + $0xe8] sm:$0xff]
  %v101 = vld [vmem:[%s1 + $0xf0] sm:$0xff]
  %v102 = vld [vmem:[%s1 + $0xf8] sm:$0xff]
  %103 = vmatpush.msra.mxu0 %v102
  %104 = vmatpush.msra.mxu0 %v101
  %105 = vmatpush.msra.mxu0 %v100
  %106 = vmatpush.msra.mxu0 %v99
  %107 = vmatpush.msra.mxu0 %v98
  %108 = vmatpush.msra.mxu0 %v97
  %109 = vmatpush.msra.mxu0 %v96
  %110 = vmatpush.msra.mxu0 %v95
  %111 = vmatpush.msra.mxu0 %v94
  %112 = vmatpush.msra.mxu0 %v93
  %113 = vmatpush.msra.mxu0 %v92
  %114 = vmatpush.msra.mxu0 %v91
  %115 = vmatpush.msra.mxu0 %v90
  %116 = vmatpush.msra.mxu0 %v89
  %117 = vmatpush.msra.mxu0 %v88
  %118 = vmatpush.msra.mxu0 %v87
  %119 = vmatmul.f32.gmra.mxu0 0.0
  %v120 = vpop.f32.mrf.mxu0
  %v121 = vadd.f32 0.0, %v120
  %122 = vdwg.mxu0
  %v123 = vadd.f32 %v59, %v121
  %v124 = vtanh.pop %v123
  %v125 = vxor.u32 %v123, 2147483648
  %v126 = vmul.f32 %v125, 1.442695
  %v127 = vpow.pop %v126
  %v128 = vadd.f32 %v127, 1.0
  %v129 = vrcp.pop %v128
  %v130 = vmul.f32 %v128, %v129
  %v131 = vsub.f32 1.0, %v130
  %v132 = vmul.f32 %v129, %v131
  %v133 = vadd.f32 %v129, %v132
  %vm134 = vweird.f32 %v128
  %vm135 = vweird.f32 %v129
  %vm136 = vmor %vm134, %vm135
  %v137 = vsel %vm136, %v129, %v133
  %v138 = vand.u32 2147483647, %v128
  %vm139 = vcmp.eq.f32.partialorder %v138, 8.507059e+37
  %v140 = vand.u32 %v128, 2147483648
  %v141 = vor.u32 1.1754944e-38, %v140
  %v142 = vsel %vm139, %v141, %v137
  %v143 = vmul.f32 1.0, %v142
  %v144 = vsel %vm86, %v124, %v143
  %145 = vrot.lane.b32.xlu0 %v144, 64
  %v146 = vpop.permute.xlu0 %145
  %v147 = vmul.f32 %v144, %v146
  %148 = vrot.lane.b32.xlu0 %v147, 32
  %v149 = vpop.permute.xlu0 %148
  %v150 = vmul.f32 %v144, 0.0
  %v151 = vadd.f32 %v150, %v149
  %v152 = vtanh.pop %v151
  %v153 = vmul.f32 %v146, %v152
  %154 = vmatpush.msra.mxu0 %v102
  %155 = vmatpush.msra.mxu0 %v101
  %156 = vmatpush.msra.mxu0 %v100
  %157 = vmatpush.msra.mxu0 %v99
  %158 = vmatpush.msra.mxu0 %v98
  %159 = vmatpush.msra.mxu0 %v97
  %160 = vmatpush.msra.mxu0 %v96
  %161 = vmatpush.msra.mxu0 %v95
  %162 = vmatpush.msra.mxu0 %v94
  %163 = vmatpush.msra.mxu0 %v93
  %164 = vmatpush.msra.mxu0 %v92
  %165 = vmatpush.msra.mxu0 %v91
  %166 = vmatpush.msra.mxu0 %v90
  %167 = vmatpush.msra.mxu0 %v89
  %168 = vmatpush.msra.mxu0 %v88
  %169 = vmatpush.msra.mxu0 %v87
  %170 = vmatmul.f32.gmra.mxu0 %v153
  %v171 = vpop.f32.mrf.mxu0
  %v172 = vadd.f32 0.0, %v171
  %173 = vdwg.mxu0
  %v174 = vadd.f32 %v62, %v172
  %v175 = vtanh.pop %v174
  %v176 = vxor.u32 %v174, 2147483648
  %v177 = vmul.f32 %v176, 1.442695
  %v178 = vpow.pop %v177
  %v179 = vadd.f32 %v178, 1.0
  %v180 = vrcp.pop %v179
  %v181 = vmul.f32 %v179, %v180
  %v182 = vsub.f32 1.0, %v181
  %v183 = vmul.f32 %v180, %v182
  %v184 = vadd.f32 %v180, %v183
  %vm185 = vweird.f32 %v179
  %vm186 = vweird.f32 %v180
  %vm187 = vmor %vm185, %vm186
  %v188 = vsel %vm187, %v180, %v184
  %v189 = vand.u32 2147483647, %v179
  %vm190 = vcmp.eq.f32.partialorder %v189, 8.507059e+37
  %v191 = vand.u32 %v179, 2147483648
  %v192 = vor.u32 1.1754944e-38, %v191
  %v193 = vsel %vm190, %v192, %v188
  %v194 = vmul.f32 1.0, %v193
  %v195 = vsel %vm86, %v175, %v194
  %196 = vrot.lane.b32.xlu0 %v195, 64
  %v197 = vpop.permute.xlu0 %196
  %v198 = vmul.f32 %v195, %v197
  %199 = vrot.lane.b32.xlu0 %v198, 32
  %v200 = vpop.permute.xlu0 %199
  %v201 = vmul.f32 %v195, %v151
  %v202 = vadd.f32 %v201, %v200
  %v203 = vtanh.pop %v202
  %v204 = vmul.f32 %v197, %v203
  %205 = vmatpush.msra.mxu0 %v102
  %206 = vmatpush.msra.mxu0 %v101
  %207 = vmatpush.msra.mxu0 %v100
  %208 = vmatpush.msra.mxu0 %v99
  %209 = vmatpush.msra.mxu0 %v98
  %210 = vmatpush.msra.mxu0 %v97
  %211 = vmatpush.msra.mxu0 %v96
  %212 = vmatpush.msra.mxu0 %v95
  %213 = vmatpush.msra.mxu0 %v94
  %214 = vmatpush.msra.mxu0 %v93
  %215 = vmatpush.msra.mxu0 %v92
  %216 = vmatpush.msra.mxu0 %v91
  %217 = vmatpush.msra.mxu0 %v90
  %218 = vmatpush.msra.mxu0 %v89
  %219 = vmatpush.msra.mxu0 %v88
  %220 = vmatpush.msra.mxu0 %v87
  %221 = vmatmul.f32.gmra.mxu0 %v204
  %v222 = vpop.f32.mrf.mxu0
  %v223 = vadd.f32 0.0, %v222
  %224 = vdwg.mxu0
  %v225 = vadd.f32 %v65, %v223
  %v226 = vtanh.pop %v225
  %v227 = vxor.u32 %v225, 2147483648
  %v228 = vmul.f32 %v227, 1.442695
  %v229 = vpow.pop %v228
  %v230 = vadd.f32 %v229, 1.0
  %v231 = vrcp.pop %v230
  %v232 = vmul.f32 %v230, %v231
  %v233 = vsub.f32 1.0, %v232
  %v234 = vmul.f32 %v231, %v233
  %v235 = vadd.f32 %v231, %v234
  %vm236 = vweird.f32 %v230
  %vm237 = vweird.f32 %v231
  %vm238 = vmor %vm236, %vm237
  %v239 = vsel %vm238, %v231, %v235
  %v240 = vand.u32 2147483647, %v230
  %vm241 = vcmp.eq.f32.partialorder %v240, 8.507059e+37
  %v242 = vand.u32 %v230, 2147483648
  %v243 = vor.u32 1.1754944e-38, %v242
  %v244 = vsel %vm241, %v243, %v239
  %v245 = vmul.f32 1.0, %v244
  %v246 = vsel %vm86, %v226, %v245
  %247 = vrot.lane.b32.xlu0 %v246, 64
  %v248 = vpop.permute.xlu0 %247
  %v249 = vmul.f32 %v246, %v248
  %250 = vrot.lane.b32.xlu0 %v249, 32
  %v251 = vpop.permute.xlu0 %250
  %v252 = vmul.f32 %v246, %v202
  %v253 = vadd.f32 %v252, %v251
  %v254 = vtanh.pop %v253
  %v255 = vmul.f32 %v248, %v254
  %256 = vmatpush.msra.mxu0 %v102
  %257 = vmatpush.msra.mxu0 %v101
  %258 = vmatpush.msra.mxu0 %v100
  %259 = vmatpush.msra.mxu0 %v99
  %260 = vmatpush.msra.mxu0 %v98
  %261 = vmatpush.msra.mxu0 %v97
  %262 = vmatpush.msra.mxu0 %v96
  %263 = vmatpush.msra.mxu0 %v95
  %264 = vmatpush.msra.mxu0 %v94
  %265 = vmatpush.msra.mxu0 %v93
  %266 = vmatpush.msra.mxu0 %v92
  %267 = vmatpush.msra.mxu0 %v91
  %268 = vmatpush.msra.mxu0 %v90
  %269 = vmatpush.msra.mxu0 %v89
  %270 = vmatpush.msra.mxu0 %v88
  %271 = vmatpush.msra.mxu0 %v87
  %272 = vmatmul.f32.gmra.mxu0 %v255
  %v273 = vpop.f32.mrf.mxu0
  %v274 = vadd.f32 0.0, %v273
  %275 = vdwg.mxu0
  %v276 = vadd.f32 %v68, %v274
  %v277 = vtanh.pop %v276
  %v278 = vxor.u32 %v276, 2147483648
  %v279 = vmul.f32 %v278, 1.442695
  %v280 = vpow.pop %v279
  %v281 = vadd.f32 %v280, 1.0
  %v282 = vrcp.pop %v281
  %v283 = vmul.f32 %v281, %v282
  %v284 = vsub.f32 1.0, %v283
  %v285 = vmul.f32 %v282, %v284
  %v286 = vadd.f32 %v282, %v285
  %vm287 = vweird.f32 %v281
  %vm288 = vweird.f32 %v282
  %vm289 = vmor %vm287, %vm288
  %v290 = vsel %vm289, %v282, %v286
  %v291 = vand.u32 2147483647, %v281
  %vm292 = vcmp.eq.f32.partialorder %v291, 8.507059e+37
  %v293 = vand.u32 %v281, 2147483648
  %v294 = vor.u32 1.1754944e-38, %v293
  %v295 = vsel %vm292, %v294, %v290
  %v296 = vmul.f32 1.0, %v295
  %v297 = vsel %vm86, %v277, %v296
  %298 = vrot.lane.b32.xlu0 %v297, 64
  %v299 = vpop.permute.xlu0 %298
  %v300 = vmul.f32 %v297, %v299
  %301 = vrot.lane.b32.xlu0 %v300, 32
  %v302 = vpop.permute.xlu0 %301
  %v303 = vmul.f32 %v297, %v253
  %v304 = vadd.f32 %v303, %v302
  %v305 = vtanh.pop %v304
  %v306 = vmul.f32 %v299, %v305
  %307 = vmatpush.msra.mxu0 %v102
  %308 = vmatpush.msra.mxu0 %v101
  %309 = vmatpush.msra.mxu0 %v100
  %310 = vmatpush.msra.mxu0 %v99
  %311 = vmatpush.msra.mxu0 %v98
  %312 = vmatpush.msra.mxu0 %v97
  %313 = vmatpush.msra.mxu0 %v96
  %314 = vmatpush.msra.mxu0 %v95
  %315 = vmatpush.msra.mxu0 %v94
  %316 = vmatpush.msra.mxu0 %v93
  %317 = vmatpush.msra.mxu0 %v92
  %318 = vmatpush.msra.mxu0 %v91
  %319 = vmatpush.msra.mxu0 %v90
  %320 = vmatpush.msra.mxu0 %v89
  %321 = vmatpush.msra.mxu0 %v88
  %322 = vmatpush.msra.mxu0 %v87
  %323 = vmatmul.f32.gmra.mxu0 %v306
  %v324 = vpop.f32.mrf.mxu0
  %v325 = vadd.f32 0.0, %v324
  %326 = vdwg.mxu0
  %v327 = vadd.f32 %v71, %v325
  %v328 = vtanh.pop %v327
  %v329 = vxor.u32 %v327, 2147483648
  %v330 = vmul.f32 %v329, 1.442695
  %v331 = vpow.pop %v330
  %v332 = vadd.f32 %v331, 1.0
  %v333 = vrcp.pop %v332
  %v334 = vmul.f32 %v332, %v333
  %v335 = vsub.f32 1.0, %v334
  %v336 = vmul.f32 %v333, %v335
  %v337 = vadd.f32 %v333, %v336
  %vm338 = vweird.f32 %v332
  %vm339 = vweird.f32 %v333
  %vm340 = vmor %vm338, %vm339
  %v341 = vsel %vm340, %v333, %v337
  %v342 = vand.u32 2147483647, %v332
  %vm343 = vcmp.eq.f32.partialorder %v342, 8.507059e+37
  %v344 = vand.u32 %v332, 2147483648
  %v345 = vor.u32 1.1754944e-38, %v344
  %v346 = vsel %vm343, %v345, %v341
  %v347 = vmul.f32 1.0, %v346
  %v348 = vsel %vm86, %v328, %v347
  %349 = vrot.lane.b32.xlu0 %v348, 64
  %v350 = vpop.permute.xlu0 %349
  %v351 = vmul.f32 %v348, %v350
  %352 = vrot.lane.b32.xlu0 %v351, 32
  %v353 = vpop.permute.xlu0 %352
  %v354 = vmul.f32 %v348, %v304
  %v355 = vadd.f32 %v354, %v353
  %v356 = vtanh.pop %v355
  %v357 = vmul.f32 %v350, %v356
  %358 = vmatpush.msra.mxu0 %v102
  %359 = vmatpush.msra.mxu0 %v101
  %360 = vmatpush.msra.mxu0 %v100
  %361 = vmatpush.msra.mxu0 %v99
  %362 = vmatpush.msra.mxu0 %v98
  %363 = vmatpush.msra.mxu0 %v97
  %364 = vmatpush.msra.mxu0 %v96
  %365 = vmatpush.msra.mxu0 %v95
  %366 = vmatpush.msra.mxu0 %v94
  %367 = vmatpush.msra.mxu0 %v93
  %368 = vmatpush.msra.mxu0 %v92
  %369 = vmatpush.msra.mxu0 %v91
  %370 = vmatpush.msra.mxu0 %v90
  %371 = vmatpush.msra.mxu0 %v89
  %372 = vmatpush.msra.mxu0 %v88
  %373 = vmatpush.msra.mxu0 %v87
  %374 = vmatmul.f32.gmra.mxu0 %v357
  %v375 = vpop.f32.mrf.mxu0
  %v376 = vadd.f32 0.0, %v375
  %377 = vdwg.mxu0
  %v378 = vadd.f32 %v74, %v376
  %v379 = vtanh.pop %v378
  %v380 = vxor.u32 %v378, 2147483648
  %v381 = vmul.f32 %v380, 1.442695
  %v382 = vpow.pop %v381
  %v383 = vadd.f32 %v382, 1.0
  %v384 = vrcp.pop %v383
  %v385 = vmul.f32 %v383, %v384
  %v386 = vsub.f32 1.0, %v385
  %v387 = vmul.f32 %v384, %v386
  %v388 = vadd.f32 %v384, %v387
  %vm389 = vweird.f32 %v383
  %vm390 = vweird.f32 %v384
  %vm391 = vmor %vm389, %vm390
  %v392 = vsel %vm391, %v384, %v388
  %v393 = vand.u32 2147483647, %v383
  %vm394 = vcmp.eq.f32.partialorder %v393, 8.507059e+37
  %v395 = vand.u32 %v383, 2147483648
  %v396 = vor.u32 1.1754944e-38, %v395
  %v397 = vsel %vm394, %v396, %v392
  %v398 = vmul.f32 1.0, %v397
  %v399 = vsel %vm86, %v379, %v398
  %400 = vrot.lane.b32.xlu0 %v399, 64
  %v401 = vpop.permute.xlu0 %400
  %v402 = vmul.f32 %v399, %v401
  %403 = vrot.lane.b32.xlu0 %v402, 32
  %v404 = vpop.permute.xlu0 %403
  %v405 = vmul.f32 %v399, %v355
  %v406 = vadd.f32 %v405, %v404
  %v407 = vtanh.pop %v406
  %v408 = vmul.f32 %v401, %v407
  %409 = vmatpush.msra.mxu0 %v102
  %410 = vmatpush.msra.mxu0 %v101
  %411 = vmatpush.msra.mxu0 %v100
  %412 = vmatpush.msra.mxu0 %v99
  %413 = vmatpush.msra.mxu0 %v98
  %414 = vmatpush.msra.mxu0 %v97
  %415 = vmatpush.msra.mxu0 %v96
  %416 = vmatpush.msra.mxu0 %v95
  %417 = vmatpush.msra.mxu0 %v94
  %418 = vmatpush.msra.mxu0 %v93
  %419 = vmatpush.msra.mxu0 %v92
  %420 = vmatpush.msra.mxu0 %v91
  %421 = vmatpush.msra.mxu0 %v90
  %422 = vmatpush.msra.mxu0 %v89
  %423 = vmatpush.msra.mxu0 %v88
  %424 = vmatpush.msra.mxu0 %v87
  %425 = vmatmul.f32.gmra.mxu0 %v408
  %v426 = vpop.f32.mrf.mxu0
  %v427 = vadd.f32 0.0, %v426
  %428 = vdwg.mxu0
  %v429 = vadd.f32 %v77, %v427
  %v430 = vtanh.pop %v429
  %v431 = vxor.u32 %v429, 2147483648
  %v432 = vmul.f32 %v431, 1.442695
  %v433 = vpow.pop %v432
  %v434 = vadd.f32 %v433, 1.0
  %v435 = vrcp.pop %v434
  %v436 = vmul.f32 %v434, %v435
  %v437 = vsub.f32 1.0, %v436
  %v438 = vmul.f32 %v435, %v437
  %v439 = vadd.f32 %v435, %v438
  %vm440 = vweird.f32 %v434
  %vm441 = vweird.f32 %v435
  %vm442 = vmor %vm440, %vm441
  %v443 = vsel %vm442, %v435, %v439
  %v444 = vand.u32 2147483647, %v434
  %vm445 = vcmp.eq.f32.partialorder %v444, 8.507059e+37
  %v446 = vand.u32 %v434, 2147483648
  %v447 = vor.u32 1.1754944e-38, %v446
  %v448 = vsel %vm445, %v447, %v443
  %v449 = vmul.f32 1.0, %v448
  %v450 = vsel %vm86, %v430, %v449
  %451 = vrot.lane.b32.xlu0 %v450, 64
  %v452 = vpop.permute.xlu0 %451
  %v453 = vmul.f32 %v450, %v452
  %454 = vrot.lane.b32.xlu0 %v453, 32
  %v455 = vpop.permute.xlu0 %454
  %v456 = vmul.f32 %v450, %v406
  %v457 = vadd.f32 %v456, %v455
  %v458 = vtanh.pop %v457
  %v459 = vmul.f32 %v452, %v458
  %460 = vmatpush.msra.mxu0 %v102
  %461 = vmatpush.msra.mxu0 %v101
  %462 = vmatpush.msra.mxu0 %v100
  %463 = vmatpush.msra.mxu0 %v99
  %464 = vmatpush.msra.mxu0 %v98
  %465 = vmatpush.msra.mxu0 %v97
  %466 = vmatpush.msra.mxu0 %v96
  %467 = vmatpush.msra.mxu0 %v95
  %468 = vmatpush.msra.mxu0 %v94
  %469 = vmatpush.msra.mxu0 %v93
  %470 = vmatpush.msra.mxu0 %v92
  %471 = vmatpush.msra.mxu0 %v91
  %472 = vmatpush.msra.mxu0 %v90
  %473 = vmatpush.msra.mxu0 %v89
  %474 = vmatpush.msra.mxu0 %v88
  %475 = vmatpush.msra.mxu0 %v87
  %476 = vmatmul.f32.gmra.mxu0 %v459
  %v477 = vpop.f32.mrf.mxu0
  %v478 = vadd.f32 0.0, %v477
  %479 = vdwg.mxu0
  %v480 = vadd.f32 %v80, %v478
  %v481 = vtanh.pop %v480
  %v482 = vxor.u32 %v480, 2147483648
  %v483 = vmul.f32 %v482, 1.442695
  %v484 = vpow.pop %v483
  %v485 = vadd.f32 %v484, 1.0
  %v486 = vrcp.pop %v485
  %v487 = vmul.f32 %v485, %v486
  %v488 = vsub.f32 1.0, %v487
  %v489 = vmul.f32 %v486, %v488
  %v490 = vadd.f32 %v486, %v489
  %vm491 = vweird.f32 %v485
  %vm492 = vweird.f32 %v486
  %vm493 = vmor %vm491, %vm492
  %v494 = vsel %vm493, %v486, %v490
  %v495 = vand.u32 2147483647, %v485
  %vm496 = vcmp.eq.f32.partialorder %v495, 8.507059e+37
  %v497 = vand.u32 %v485, 2147483648
  %v498 = vor.u32 1.1754944e-38, %v497
  %v499 = vsel %vm496, %v498, %v494
  %v500 = vmul.f32 1.0, %v499
  %v501 = vsel %vm86, %v481, %v500
  %502 = vrot.lane.b32.xlu0 %v501, 64
  %v503 = vpop.permute.xlu0 %502
  %v504 = vmul.f32 %v501, %v503
  %505 = vrot.lane.b32.xlu0 %v504, 32
  %v506 = vpop.permute.xlu0 %505
  %v507 = vmul.f32 %v501, %v457
  %v508 = vadd.f32 %v507, %v506
  %v509 = vtanh.pop %v508
  %v510 = vmul.f32 %v503, %v509
  %v511 = vld [vmem:[%s1 + $0x100] sm:$0xff]
  %v512 = vld [vmem:[%s1 + $0x108] sm:$0xff]
  %v513 = vld [vmem:[%s1 + $0x110] sm:$0xff]
  %v514 = vld [vmem:[%s1 + $0x118] sm:$0xff]
  %v515 = vld [vmem:[%s1 + $0x120] sm:$0xff]
  %v516 = vld [vmem:[%s1 + $0x128] sm:$0xff]
  %v517 = vld [vmem:[%s1 + $0x130] sm:$0xff]
  %v518 = vld [vmem:[%s1 + $0x138] sm:$0xff]
  %v519 = vld [vmem:[%s1 + $0x140] sm:$0xff]
  %v520 = vld [vmem:[%s1 + $0x148] sm:$0xff]
  %v521 = vld [vmem:[%s1 + $0x150] sm:$0xff]
  %v522 = vld [vmem:[%s1 + $0x158] sm:$0xff]
  %v523 = vld [vmem:[%s1 + $0x160] sm:$0xff]
  %v524 = vld [vmem:[%s1 + $0x168] sm:$0xff]
  %v525 = vld [vmem:[%s1 + $0x170] sm:$0xff]
  %v526 = vld [vmem:[%s1 + $0x178] sm:$0xff]
  %v527 = vperm.slane %v15, 0
  %528 = vmatpush.msra.mxu0 %v526
  %529 = vmatpush.msra.mxu0 %v525
  %530 = vmatpush.msra.mxu0 %v524
  %531 = vmatpush.msra.mxu0 %v523
  %532 = vmatpush.msra.mxu0 %v522
  %533 = vmatpush.msra.mxu0 %v521
  %534 = vmatpush.msra.mxu0 %v520
  %535 = vmatpush.msra.mxu0 %v519
  %536 = vmatpush.msra.mxu0 %v518
  %537 = vmatpush.msra.mxu0 %v517
  %538 = vmatpush.msra.mxu0 %v516
  %539 = vmatpush.msra.mxu0 %v515
  %540 = vmatpush.msra.mxu0 %v514
  %541 = vmatpush.msra.mxu0 %v513
  %542 = vmatpush.msra.mxu0 %v512
  %543 = vmatpush.msra.mxu0 %v511
  %544 = vmatmul.f32.gmra.mxu0 %v153
  %v545 = vpop.f32.mrf.mxu0
  %v546 = vadd.f32 %v527, %v545
  %547 = vmatmul.f32.gmra.mxu0 %v204
  %v548 = vpop.f32.mrf.mxu0
  %v549 = vadd.f32 %v527, %v548
  %550 = vmatmul.f32.gmra.mxu0 %v255
  %v551 = vpop.f32.mrf.mxu0
  %v552 = vadd.f32 %v527, %v551
  %553 = vmatmul.f32.gmra.mxu0 %v306
  %v554 = vpop.f32.mrf.mxu0
  %v555 = vadd.f32 %v527, %v554
  %556 = vmatmul.f32.gmra.mxu0 %v357
  %v557 = vpop.f32.mrf.mxu0
  %v558 = vadd.f32 %v527, %v557
  %559 = vmatmul.f32.gmra.mxu0 %v408
  %v560 = vpop.f32.mrf.mxu0
  %v561 = vadd.f32 %v527, %v560
  %562 = vmatmul.f32.gmra.mxu0 %v459
  %v563 = vpop.f32.mrf.mxu0
  %v564 = vadd.f32 %v527, %v563
  %565 = vmatmul.f32.gmra.mxu0 %v510
  %v566 = vpop.f32.mrf.mxu0
  %v567 = vadd.f32 %v527, %v566
  %568 = vdwg.mxu0
  %569 = vst [vmem:[%s3] sm:$0xff] %v546
  %570 = vst [vmem:[%s3 + $0x8] sm:$0xff] %v549
  %571 = vst [vmem:[%s3 + $0x10] sm:$0xff] %v552
  %572 = vst [vmem:[%s3 + $0x18] sm:$0xff] %v555
  %573 = vst [vmem:[%s3 + $0x20] sm:$0xff] %v558
  %574 = vst [vmem:[%s3 + $0x28] sm:$0xff] %v561
  %575 = vst [vmem:[%s3 + $0x30] sm:$0xff] %v564
  %576 = vst [vmem:[%s3 + $0x38] sm:$0xff] %v567
  // Predicated region
  $region14: #{lstm_autoencoder_forward.1} parent=0 // pred_check
    _
  $region15: #{lstm_autoencoder_forward.1} parent=0 // pred_check_branch
    %578 = sbr.rel (0) target = $region17
  $region16: #{lstm_autoencoder_forward.1} parent=0 // pred_region
    _
  $region17: #{lstm_autoencoder_forward.1} parent=0 // pred_fallthru
    _
  // Predicated region
  $region18: #{lstm_autoencoder_forward.1} parent=0 // pred_check
    _
  $region19: #{lstm_autoencoder_forward.1} parent=0 // pred_check_branch
    %580 = sbr.rel (0) target = $region21
  $region20: #{lstm_autoencoder_forward.1} parent=0 // pred_region
    _
  $region21: #{lstm_autoencoder_forward.1} parent=0 // pred_fallthru
    _

</llo_original>
